<compile_context>
chip_gen: v7x
topology: tpu7x:2x2x1
jax: 0.10.0
libtpu: 0.0.40
codegen_flags: <defaults>
</compile_context>

<pallas_src>
import functools

import jax
import jax.numpy as jnp
from jax import lax
from jax.experimental import pallas as pl
from jax.experimental.pallas import tpu as pltpu


LANE = 128
SUBLANE = 8
MAX_TILE_ROWS = 4096   # (4096, 128) f32 = 2 MiB per input per buffer
CHUNK_ROWS = 64        # rows per in-kernel accumulation step (8 vregs/array)


def _num_tensorcores() -> int:
    """Best-effort TC-per-chip detection (2 on v7x-style parts, else 1)."""
    try:
        kind = jax.devices()[0].device_kind.lower()
    except Exception:
        return 1
    return 2 if ("v7" in kind or "7x" in kind) else 1


def _focal_weight(one_minus_p, gamma):
    """(1 - p)**gamma without a float-exponent pow when gamma is integral."""
    g = float(gamma)
    if g == 2.0:
        return one_minus_p * one_minus_p
    if g.is_integer() and g >= 1.0:
        w = one_minus_p
        for _ in range(int(g) - 1):
            w = w * one_minus_p
        return w
    return jnp.power(one_minus_p, gamma)


def _make_kernel(*, rows, tile_rows, tiles_per_core, focal, drop_nan,
                 alpha, gamma):
    n_full = tile_rows // CHUNK_ROWS
    rem = tile_rows - n_full * CHUNK_ROWS

    def kernel(x_ref, t_ref, *out_refs):
        sum_ref = out_refs[0]
        cnt_ref = out_refs[1] if drop_nan else None

        @pl.when(pl.program_id(1) == 0)
        def _init():
            sum_ref[...] = jnp.zeros_like(sum_ref)
            if drop_nan:
                cnt_ref[...] = jnp.zeros_like(cnt_ref)

        # "Virtual" (unclamped) block index: matches the (clamped) index_map
        # for every real block; for the duplicate block a short second core
        # may re-read on the 2-core path, it points past `rows`, so every row
        # masks out and the duplicate contributes exactly zero.
        virt_block = pl.program_id(0) * tiles_per_core + pl.program_id(1)
        block_row0 = virt_block * tile_rows

        def accumulate(row_off, c_rows, local_iota):
            x = x_ref[pl.ds(row_off, c_rows), :].astype(jnp.float32)
            t = t_ref[pl.ds(row_off, c_rows), :].astype(jnp.float32)

            # Rows at/after `rows` belong to the padded tail of the partial
            # last block (garbage data) -> mask them out entirely.
            row_valid = local_iota < (rows - (block_row0 + row_off))
            if drop_nan:
                valid = jnp.logical_and(row_valid,
                                        jnp.logical_not(jnp.isnan(t)))
                t = jnp.where(valid, t, 1.0)      # sanitize before the math
            else:
                valid = row_valid

            # PyTorch's binary_cross_entropy clamps the log terms at -100.
            log_p = jnp.maximum(jnp.log(x), -100.0)
            log_1mp = jnp.maximum(jnp.log(1.0 - x), -100.0)
            loss = -(t * log_p + (1.0 - t) * log_1mp)
            if focal:
                loss = alpha * _focal_weight(1.0 - jnp.exp(-loss), gamma) * loss
            loss = jnp.where(valid, loss, 0.0)

            if c_rows % SUBLANE == 0:
                groups = c_rows // SUBLANE
                # Pure VPU vreg adds into the resident (8,128) accumulators;
                # no per-step cross-lane (XLU) reduction.
                sum_ref[...] += loss.reshape(groups, SUBLANE, LANE).sum(axis=0)
                if drop_nan:
                    cnt = valid.astype(jnp.float32)
                    cnt_ref[...] += cnt.reshape(groups, SUBLANE, LANE).sum(axis=0)
            else:
                # Only reachable for tiny, oddly-shaped inputs.
                sum_ref[pl.ds(0, 1), :] += loss.sum(axis=0, keepdims=True)
                if drop_nan:
                    cnt_ref[pl.ds(0, 1), :] += (
                        valid.astype(jnp.float32).sum(axis=0, keepdims=True))

        if n_full > 0:
            chunk_iota = lax.broadcasted_iota(jnp.int32, (CHUNK_ROWS, LANE), 0)

            def body(k, carry):
                accumulate(pl.multiple_of(k * CHUNK_ROWS, CHUNK_ROWS),
                           CHUNK_ROWS, chunk_iota)
                return carry

            lax.fori_loop(0, n_full, body, 0)

        if rem > 0:
            rem_iota = lax.broadcasted_iota(jnp.int32, (rem, LANE), 0)
            accumulate(n_full * CHUNK_ROWS, rem, rem_iota)

    return kernel


def bce_loss(inputs, targets, *, focal: bool = True, drop_nan: bool = True,
             alpha: float = 0.25, gamma: float = 2.0):
    x = inputs.reshape(-1)            # keep native dtype; upcast in-kernel
    t = targets.reshape(-1)
    n = x.shape[0]

    rows = n // LANE
    n_main = rows * LANE

    main_sum = jnp.float32(0.0)
    main_cnt = jnp.float32(0.0)

    if rows > 0:
        # Free reshape (bitcast) when n is a multiple of 128 (no jnp.pad copy).
        x_main = x[:n_main].reshape(rows, LANE)
        t_main = t[:n_main].reshape(rows, LANE)

        tile_rows = rows if rows <= MAX_TILE_ROWS else MAX_TILE_ROWS
        total_tiles = pl.cdiv(rows, tile_rows)
        ncores = _num_tensorcores() if total_tiles > 1 else 1
        tiles_per_core = pl.cdiv(total_tiles, ncores)

        if ncores == 1:
            in_map = lambda c, i: (i, 0)
            lead_sem = "arbitrary"
        else:
            # Clamp so an over-provisioned core re-reads the last real block
            # (its contribution is masked to zero in-kernel via the unclamped
            # virtual block index).
            in_map = lambda c, i: (
                jnp.minimum(c * tiles_per_core + i, total_tiles - 1), 0)
            lead_sem = getattr(pltpu, "CORE_PARALLEL", "parallel")
        out_map = lambda c, i: (c, 0)

        kernel = _make_kernel(rows=rows, tile_rows=tile_rows,
                              tiles_per_core=tiles_per_core, focal=focal,
                              drop_nan=drop_nan, alpha=alpha, gamma=gamma)

        out_shape = [jax.ShapeDtypeStruct((ncores * SUBLANE, LANE), jnp.float32)]
        out_specs = [pl.BlockSpec((SUBLANE, LANE), out_map)]
        if drop_nan:
            out_shape.append(
                jax.ShapeDtypeStruct((ncores * SUBLANE, LANE), jnp.float32))
            out_specs.append(pl.BlockSpec((SUBLANE, LANE), out_map))

        tile_in_bytes = tile_rows * LANE * (x_main.dtype.itemsize
                                            + t_main.dtype.itemsize)
        # 2x for double-buffering + headroom; never below the v5e default.
        vmem_limit = int(max(16 << 20, 2 * tile_in_bytes + (2 << 20)))

        outs = pl.pallas_call(
            kernel,
            out_shape=tuple(out_shape),
            grid_spec=pltpu.PrefetchScalarGridSpec(
                num_scalar_prefetch=0,
                grid=(ncores, tiles_per_core),
                in_specs=[
                    pl.BlockSpec((tile_rows, LANE), in_map),
                    pl.BlockSpec((tile_rows, LANE), in_map),
                ],
                out_specs=tuple(out_specs),
            ),
            compiler_params=pltpu.CompilerParams(
                dimension_semantics=(lead_sem, "arbitrary"),
                vmem_limit_bytes=vmem_limit),
        )(x_main, t_main)

        main_sum = jnp.sum(outs[0])
        if drop_nan:
            main_cnt = jnp.sum(outs[1])

    # Sub-128-element remainder: handled in plain JAX (at most 127 elements).
    tail_sum = jnp.float32(0.0)
    tail_cnt = jnp.float32(0.0)
    if n_main < n:
        xt = x[n_main:].astype(jnp.float32)
        tt = t[n_main:].astype(jnp.float32)
        if drop_nan:
            v = jnp.logical_not(jnp.isnan(tt))
            tt = jnp.where(v, tt, 1.0)
        log_p = jnp.maximum(jnp.log(xt), -100.0)
        log_1mp = jnp.maximum(jnp.log(1.0 - xt), -100.0)
        l = -(tt * log_p + (1.0 - tt) * log_1mp)
        if focal:
            l = alpha * _focal_weight(1.0 - jnp.exp(-l), gamma) * l
        if drop_nan:
            l = jnp.where(v, l, 0.0)
            tail_cnt = jnp.sum(v.astype(jnp.float32))
        tail_sum = jnp.sum(l)

    total_sum = main_sum + tail_sum
    if drop_nan:
        denom = main_cnt + tail_cnt
    else:
        denom = jnp.float32(n)
    return total_sum / denom


def _bce_loss_ref(inputs, targets, *, focal=True, drop_nan=True,
                  alpha=0.25, gamma=2.0):
    """Pure-JAX reference replicating the PyTorch semantics."""
    x = inputs.reshape(-1).astype(jnp.float32)
    t = targets.reshape(-1).astype(jnp.float32)
    valid = ~jnp.isnan(t) if drop_nan else jnp.ones_like(t, dtype=bool)
    t_s = jnp.where(valid, t, 0.0)
    x_s = jnp.where(valid, x, 0.5)
    loss = -(t_s * jnp.maximum(jnp.log(x_s), -100.0)
             + (1.0 - t_s) * jnp.maximum(jnp.log(1.0 - x_s), -100.0))
    if focal:
        loss = alpha * (1.0 - jnp.exp(-loss)) ** gamma * loss
    loss = jnp.where(valid, loss, 0.0)
    return jnp.sum(loss) / jnp.sum(valid.astype(jnp.float32))


if __name__ == "__main__":
    key = jax.random.PRNGKey(0)
    k1, k2, k3 = jax.random.split(key, 3)

    # NCHW-shaped predictions in (0,1) and binary-ish targets with some NaNs.
    shape = (2, 4, 16, 16)
    inputs = jax.nn.sigmoid(jax.random.normal(k1, shape, dtype=jnp.float32))
    targets_clean = (jax.random.uniform(k2, shape) > 0.5).astype(jnp.float32)
    nan_mask = jax.random.uniform(k3, shape) < 0.1
    targets = jnp.where(nan_mask, jnp.nan, targets_clean)

    # Focal + NaN-dropping (two-output kernel path).
    out = bce_loss(inputs, targets, focal=True, drop_nan=True,
                   alpha=0.25, gamma=2.0)
    out = jax.block_until_ready(out)
    ref = _bce_loss_ref(inputs, targets, focal=True, drop_nan=True,
                        alpha=0.25, gamma=2.0)
    assert jnp.isfinite(out), "kernel produced non-finite loss"
    assert jnp.allclose(out, ref, rtol=1e-5, atol=1e-6), (out, ref)

    # Plain BCE, no NaN-dropping (single-output kernel path, static denom).
    out2 = bce_loss(inputs, targets_clean, focal=False, drop_nan=False)
    out2 = jax.block_until_ready(out2)
    ref2 = _bce_loss_ref(inputs, targets_clean, focal=False, drop_nan=False)
    assert jnp.isfinite(out2), "kernel produced non-finite loss"
    assert jnp.allclose(out2, ref2, rtol=1e-5, atol=1e-6), (out2, ref2)

    print("KERNEL_OK")
</pallas_src>

<mosaic_0001>
module attributes {stable_mosaic.version = 11 : i64} {
  func.func @kernel(%arg0: i32, %arg1: i32, %arg2: memref<16x128xf32, #tpu.memory_space<vmem>>, %arg3: memref<16x128xf32, #tpu.memory_space<vmem>>, %arg4: memref<8x128xf32, #tpu.memory_space<vmem>>, %arg5: memref<8x128xf32, #tpu.memory_space<vmem>>) attributes {dimension_semantics = [#tpu.dimension_semantics<arbitrary>, #tpu.dimension_semantics<arbitrary>], iteration_bounds = array<i64: 1, 1>, scalar_prefetch = 0 : i64, scratch_operands = 0 : i64, tpu.core_type = #tpu.core_type<tc>, window_params = [{transform_indices = @transform_0, window_bounds = array<i64: 16, 128>}, {transform_indices = @transform_1, window_bounds = array<i64: 16, 128>}, {transform_indices = @transform_2, window_bounds = array<i64: 8, 128>}, {transform_indices = @transform_3, window_bounds = array<i64: 8, 128>}]} {
    %c0_i32 = arith.constant 0 : i32
    %0 = arith.cmpi eq, %arg1, %c0_i32 : i32
    %1 = arith.extui %0 : i1 to i32
    %c0_i32_0 = arith.constant 0 : i32
    %2 = arith.cmpi ne, %1, %c0_i32_0 : i32
    scf.if %2 {
      %cst_26 = arith.constant 0.000000e+00 : f32
      %56 = vector.broadcast %cst_26 : f32 to vector<8x128xf32>
      %c0_27 = arith.constant 0 : index
      %c0_28 = arith.constant 0 : index
      %57 = vector.load %arg4[%c0_27, %c0_28] : memref<8x128xf32, #tpu.memory_space<vmem>>, vector<8x128xf32>
      tpu.vector_store %arg4[%c0_27, %c0_28], %56 {strides = array<i32>} : memref<8x128xf32, #tpu.memory_space<vmem>>, vector<8x128xf32>,
      %cst_29 = arith.constant 0.000000e+00 : f32
      %58 = vector.broadcast %cst_29 : f32 to vector<8x128xf32>
      %c0_30 = arith.constant 0 : index
      %c0_31 = arith.constant 0 : index
      %59 = vector.load %arg5[%c0_30, %c0_31] : memref<8x128xf32, #tpu.memory_space<vmem>>, vector<8x128xf32>
      tpu.vector_store %arg5[%c0_30, %c0_31], %58 {strides = array<i32>} : memref<8x128xf32, #tpu.memory_space<vmem>>, vector<8x128xf32>,
    } else {
    }
    %c1_i32 = arith.constant 1 : i32
    %3 = arith.muli %arg0, %c1_i32 : i32
    %4 = arith.addi %3, %arg1 : i32
    %c16_i32 = arith.constant 16 : i32
    %5 = arith.muli %4, %c16_i32 : i32
    %6 = tpu.iota {dimensions = array<i32: 0>} : vector<16x128xi32>
    %c0 = arith.constant 0 : index
    %c0_1 = arith.constant 0 : index
    %7 = vector.load %arg2[%c0, %c0_1] : memref<16x128xf32, #tpu.memory_space<vmem>>, vector<16x128xf32>
    %c0_2 = arith.constant 0 : index
    %c0_3 = arith.constant 0 : index
    %8 = vector.load %arg3[%c0_2, %c0_3] : memref<16x128xf32, #tpu.memory_space<vmem>>, vector<16x128xf32>
    %c0_i32_4 = arith.constant 0 : i32
    %9 = arith.addi %5, %c0_i32_4 : i32
    %c16_i32_5 = arith.constant 16 : i32
    %10 = arith.subi %c16_i32_5, %9 : i32
    %11 = vector.broadcast %10 : i32 to vector<16x128xi32>
    %12 = arith.cmpi slt, %6, %11 : vector<16x128xi32>
    %13 = arith.cmpf one, %8, %8 : vector<16x128xf32>
    %cst = arith.constant dense<true> : vector<16x128xi1>
    %14 = arith.xori %13, %cst : vector<16x128xi1>
    %15 = arith.andi %12, %14 : vector<16x128xi1>
    %cst_6 = arith.constant 1.000000e+00 : f32
    %16 = vector.broadcast %cst_6 : f32 to vector<16x128xf32>
    %17 = arith.select %15, %8, %16 : vector<16x128xi1>, vector<16x128xf32>
    %18 = math.log %7 : vector<16x128xf32>
    %cst_7 = arith.constant -1.000000e+02 : f32
    %19 = vector.broadcast %cst_7 : f32 to vector<16x128xf32>
    %20 = arith.maximumf %18, %19 : vector<16x128xf32>
    %cst_8 = arith.constant 1.000000e+00 : f32
    %21 = vector.broadcast %cst_8 : f32 to vector<16x128xf32>
    %22 = arith.subf %21, %7 : vector<16x128xf32>
    %23 = math.log %22 : vector<16x128xf32>
    %cst_9 = arith.constant -1.000000e+02 : f32
    %24 = vector.broadcast %cst_9 : f32 to vector<16x128xf32>
    %25 = arith.maximumf %23, %24 : vector<16x128xf32>
    %26 = arith.mulf %17, %20 : vector<16x128xf32>
    %cst_10 = arith.constant 1.000000e+00 : f32
    %27 = vector.broadcast %cst_10 : f32 to vector<16x128xf32>
    %28 = arith.subf %27, %17 : vector<16x128xf32>
    %29 = arith.mulf %28, %25 : vector<16x128xf32>
    %30 = arith.addf %26, %29 : vector<16x128xf32>
    %cst_11 = arith.constant 0.000000e+00 : f32
    %31 = vector.broadcast %cst_11 : f32 to vector<16x128xf32>
    %32 = arith.subf %31, %30 : vector<16x128xf32>
    %cst_12 = arith.constant 0.000000e+00 : f32
    %33 = vector.broadcast %cst_12 : f32 to vector<16x128xf32>
    %34 = arith.subf %33, %32 : vector<16x128xf32>
    %35 = math.exp %34 : vector<16x128xf32>
    %cst_13 = arith.constant 1.000000e+00 : f32
    %36 = vector.broadcast %cst_13 : f32 to vector<16x128xf32>
    %37 = arith.subf %36, %35 : vector<16x128xf32>
    %38 = arith.mulf %37, %37 : vector<16x128xf32>
    %cst_14 = arith.constant 2.500000e-01 : f32
    %39 = vector.broadcast %cst_14 : f32 to vector<16x128xf32>
    %40 = arith.mulf %39, %38 : vector<16x128xf32>
    %41 = arith.mulf %40, %32 : vector<16x128xf32>
    %cst_15 = arith.constant 0.000000e+00 : f32
    %42 = vector.broadcast %cst_15 : f32 to vector<16x128xf32>
    %43 = arith.select %15, %41, %42 : vector<16x128xi1>, vector<16x128xf32>
    %c0_16 = arith.constant 0 : index
    %c0_17 = arith.constant 0 : index
    %44 = vector.load %arg4[%c0_16, %c0_17] : memref<8x128xf32, #tpu.memory_space<vmem>>, vector<8x128xf32>
    %45 = vector.shape_cast %43 : vector<16x128xf32> to vector<2x8x128xf32>
    %cst_18 = arith.constant dense<0.000000e+00> : vector<8x128xf32>
    %46 = vector.multi_reduction <add>, %45, %cst_18 [0] : vector<2x8x128xf32> to vector<8x128xf32>
    %47 = arith.addf %44, %46 : vector<8x128xf32>
    %c0_19 = arith.constant 0 : index
    %c0_20 = arith.constant 0 : index
    %48 = vector.load %arg4[%c0_19, %c0_20] : memref<8x128xf32, #tpu.memory_space<vmem>>, vector<8x128xf32>
    tpu.vector_store %arg4[%c0_19, %c0_20], %47 {strides = array<i32>} : memref<8x128xf32, #tpu.memory_space<vmem>>, vector<8x128xf32>,
    %49 = arith.extui %15 : vector<16x128xi1> to vector<16x128xi32>
    %50 = arith.sitofp %49 : vector<16x128xi32> to vector<16x128xf32>
    %c0_21 = arith.constant 0 : index
    %c0_22 = arith.constant 0 : index
    %51 = vector.load %arg5[%c0_21, %c0_22] : memref<8x128xf32, #tpu.memory_space<vmem>>, vector<8x128xf32>
    %52 = vector.shape_cast %50 : vector<16x128xf32> to vector<2x8x128xf32>
    %cst_23 = arith.constant dense<0.000000e+00> : vector<8x128xf32>
    %53 = vector.multi_reduction <add>, %52, %cst_23 [0] : vector<2x8x128xf32> to vector<8x128xf32>
    %54 = arith.addf %51, %53 : vector<8x128xf32>
    %c0_24 = arith.constant 0 : index
    %c0_25 = arith.constant 0 : index
    %55 = vector.load %arg5[%c0_24, %c0_25] : memref<8x128xf32, #tpu.memory_space<vmem>>, vector<8x128xf32>
    tpu.vector_store %arg5[%c0_24, %c0_25], %54 {strides = array<i32>} : memref<8x128xf32, #tpu.memory_space<vmem>>, vector<8x128xf32>,
    return
  }
  func.func @transform_0(%arg0: i32, %arg1: i32) -> (i32, i32) {
    %c0_i32 = arith.constant 0 : i32
    %c0_i32_0 = arith.constant 0 : i32
    return %arg1, %c0_i32 : i32, i32
  }
  func.func @transform_1(%arg0: i32, %arg1: i32) -> (i32, i32) {
    %c0_i32 = arith.constant 0 : i32
    %c0_i32_0 = arith.constant 0 : i32
    return %arg1, %c0_i32 : i32, i32
  }
  func.func @transform_2(%arg0: i32, %arg1: i32) -> (i32, i32) {
    %c0_i32 = arith.constant 0 : i32
    %c0_i32_0 = arith.constant 0 : i32
    return %arg0, %c0_i32 : i32, i32
  }
  func.func @transform_3(%arg0: i32, %arg1: i32) -> (i32, i32) {
    %c0_i32 = arith.constant 0 : i32
    %c0_i32_0 = arith.constant 0 : i32
    return %arg0, %c0_i32 : i32, i32
  }
}

</mosaic_0001>

<llo_original>
// kernel: tpu_custom_call.1
$region0: #{tpu_custom_call.1}
  #allocation0 [shape = 'u32[]', space=smem, size = 0x4, offset = 0x4, fixed_abs, tag = 'smem constant byte address 0x4 - core index']
  #allocation1 [shape = 'u32[144,128]{1,0:T(1,128)}', space=vmem, size = 0x12000, scoped, tag = 'internal scratch']
  %s0 = inlined_call_operand.hbm [shape: f32[16,128], index: 0, kind: input, shape index: {}]
  %s1 = inlined_call_operand.hbm [shape: f32[16,128], index: 1, kind: input, shape index: {}]
  %s2 = inlined_call_operand.hbm [shape: f32[8,128], index: 2, kind: output, shape index: {0}]
  %s3 = inlined_call_operand.hbm [shape: f32[8,128], index: 3, kind: output, shape index: {1}]
  %4 = xla_tuple %s2, %s3
  %s5 = sld [smem:[#allocation0]]
  $region38: #{tpu_custom_call.1} parent=0
    _
  %s7 = ssub.s32 1, %s5
  %s8 = scalar_select 0, %s7, %s5
  $region1: #{tpu_custom_call.1} parent=0
    #allocation2 [shape = 'u8[8192]{0}', space=vmem, size = 0x2000, scoped, tag = 'input window, operand 0, single buffered']
    #allocation3 [shape = 's32[1]{0}', space=sflag, size = 0x4, scoped, tag = 'scoped memory for tpu_custom_call.1']
    #allocation4 [shape = 's32[1]{0}', space=sflag, size = 0x4, scoped, tag = 'scoped memory for tpu_custom_call.1']
    #allocation5 [shape = 'u8[8192]{0}', space=vmem, size = 0x2000, scoped, tag = 'input window, operand 1, single buffered']
    #allocation6 [shape = 's32[1]{0}', space=sflag, size = 0x4, scoped, tag = 'scoped memory for tpu_custom_call.1']
    #allocation7 [shape = 'u8[4096]{0}', space=vmem, size = 0x1000, scoped, tag = 'output window, operand 0, single buffered']
    #allocation8 [shape = 'u8[4096]{0}', space=vmem, size = 0x1000, scoped, tag = 'output window, operand 1, single buffered']
    #allocation9 [shape = 's32[1]{0}', space=sflag, size = 0x4, scoped, tag = 'scoped memory for tpu_custom_call.1']
    %9 = vsyncpa [#allocation3], 0
    %10 = vsyncpa [#allocation6], 0
    %11 = vsyncpa [#allocation4], 0
    %12 = vsyncpa [#allocation9], 0
    // Predicated region
    $region2: #{tpu_custom_call.1} parent=1 // pred_check
      _
    $region3: #{tpu_custom_call.1} parent=1 // pred_check_branch
      %14 = sbr.rel (0) target = $region5
    $region4: #{tpu_custom_call.1} parent=1 // pred_region
      %s16 = ssub.s32 256, 256
      %17 = vsyncadd [#allocation3], %s16
      %s18 = sshll.u32 [#allocation2], 4
      %s19 = int_to_ptr.vmem [resolvable:$true] %s18
      %24 = dma.hbm_to_vmem [thread:$0]  %s0, 256, %s19, [#allocation3], 128, 128, 8
    $region5: #{tpu_custom_call.1} parent=1 // pred_fallthru
      _
    // Predicated region
    $region6: #{tpu_custom_call.1} parent=1 // pred_check
      _
    $region7: #{tpu_custom_call.1} parent=1 // pred_check_branch
      %26 = sbr.rel (0) target = $region9
    $region8: #{tpu_custom_call.1} parent=1 // pred_region
      %s28 = ssub.s32 256, 256
      %29 = vsyncadd [#allocation6], %s28
      %s30 = sshll.u32 [#allocation5], 4
      %s31 = int_to_ptr.vmem [resolvable:$true] %s30
      %36 = dma.hbm_to_vmem [thread:$0]  %s1, 256, %s31, [#allocation6], 128, 128, 8
    $region9: #{tpu_custom_call.1} parent=1 // pred_fallthru
      _
    // Predicated region
    $region10: #{tpu_custom_call.1} parent=1 // pred_check
      _
    $region11: #{tpu_custom_call.1} parent=1 // pred_check_branch
      %38 = sbr.rel (0) target = $region13
    $region12: #{tpu_custom_call.1} parent=1 // pred_region
      %39 = dma.done [#allocation3], 256
    $region13: #{tpu_custom_call.1} parent=1 // pred_fallthru
      _
    // Predicated region
    $region14: #{tpu_custom_call.1} parent=1 // pred_check
      _
    $region15: #{tpu_custom_call.1} parent=1 // pred_check_branch
      %41 = sbr.rel (0) target = $region17
    $region16: #{tpu_custom_call.1} parent=1 // pred_region
      %42 = dma.done [#allocation6], 256
    $region17: #{tpu_custom_call.1} parent=1 // pred_fallthru
      _
    %p43 = scmp.eq.s32.totalorder 0, 0
    // Predicated region
    $region18: #{tpu_custom_call.1} parent=1 // pred_check
      %p44 = pneg %p43
    $region19: #{tpu_custom_call.1} parent=1 // pred_check_branch
      %46 = sbr.rel (%p44) target = $region21
    $region20: #{tpu_custom_call.1} parent=1 // pred_region
      %47 = vst [vmem:[#allocation7] sm:$0xff] 0.0
      %48 = vst [vmem:[#allocation8] sm:$0xff] 0.0
    $region21: #{tpu_custom_call.1} parent=1 // pred_fallthru
      _
    %s49 = sadd.s32 0, 0
    %s50 = smul.u32 %s49, 16
    %v51 = vlaneseq
    %v52 = vshrl.u32 %v51, 7
    %v53 = vadd.s32 %v52, 8
    %v54 = vld [vmem:[#allocation2] sm:$0xff]
    %v55 = vld [vmem:[#allocation2 + $0x8] sm:$0xff]
    %v56 = vld [vmem:[#allocation5] sm:$0xff]
    %v57 = vld [vmem:[#allocation5 + $0x8] sm:$0xff]
    %s58 = ssub.s32 16, %s50
    %v59 = vstv %s58
    %vm60 = vcmp.lt.s32.totalorder %v52, %v59
    %vm61 = vcmp.lt.s32.totalorder %v53, %v59
    %vm62 = vcmp.ne.f32.partialorder %v56, %v56
    %vm63 = vcmp.ne.f32.partialorder %v57, %v57
    %vm64 = vmxor %vm62, 1
    %vm65 = vmxor %vm63, 1
    %vm66 = vmand %vm60, %vm64
    %vm67 = vmand %vm61, %vm65
    %v68 = vsel %vm66, %v56, 1.0
    %v69 = vsel %vm67, %v57, 1.0
    %v70 = vlog2.pop %v54
    %v71 = vmul.f32 %v70, 0.6931472
    %v72 = vlog2.pop %v55
    %v73 = vmul.f32 %v72, 0.6931472
    %v74 = vmax.f32 %v71, -100.0
    %v75 = vmax.f32 %v73, -100.0
    %v76 = vsub.f32 1.0, %v54
    %v77 = vsub.f32 1.0, %v55
    %v78 = vlog2.pop %v76
    %v79 = vmul.f32 %v78, 0.6931472
    %v80 = vlog2.pop %v77
    %v81 = vmul.f32 %v80, 0.6931472
    %v82 = vmax.f32 %v79, -100.0
    %v83 = vmax.f32 %v81, -100.0
    %v84 = vmul.f32 %v68, %v74
    %v85 = vmul.f32 %v69, %v75
    %v86 = vsub.f32 1.0, %v68
    %v87 = vsub.f32 1.0, %v69
    %v88 = vmul.f32 %v86, %v82
    %v89 = vmul.f32 %v87, %v83
    %v90 = vadd.f32 %v84, %v88
    %v91 = vadd.f32 %v85, %v89
    %v92 = vsub.f32 0.0, %v90
    %v93 = vsub.f32 0.0, %v91
    %v94 = vsub.f32 0.0, %v92
    %v95 = vsub.f32 0.0, %v93
    %v96 = vmul.f32 %v94, 1.442695
    %v97 = vpow.pop %v96
    %v98 = vmul.f32 %v95, 1.442695
    %v99 = vpow.pop %v98
    %v100 = vsub.f32 1.0, %v97
    %v101 = vsub.f32 1.0, %v99
    %v102 = vmul.f32 %v100, %v100
    %v103 = vmul.f32 %v101, %v101
    %v104 = vmul.f32 %v102, 0.25
    %v105 = vmul.f32 %v103, 0.25
    %v106 = vmul.f32 %v104, %v92
    %v107 = vmul.f32 %v105, %v93
    %v108 = vsel %vm66, %v106, 0.0
    %v109 = vsel %vm67, %v107, 0.0
    %v110 = vld [vmem:[#allocation7] sm:$0xff]
    %v111 = vadd.f32 %v108, %v109
    %v112 = vadd.f32 %v110, %v111
    %113 = vst [vmem:[#allocation7] sm:$0xff] %v112
    %v114 = vsel %vm66, 1, 0
    %v115 = vsel %vm67, 1, 0
    %v116 = vcvt.s32.f32 %v114
    %v117 = vcvt.s32.f32 %v115
    %v118 = vld [vmem:[#allocation8] sm:$0xff]
    %v119 = vadd.f32 %v116, %v117
    %v120 = vadd.f32 %v118, %v119
    %121 = vst [vmem:[#allocation8] sm:$0xff] %v120
    // Predicated region
    $region22: #{tpu_custom_call.1} parent=1 // pred_check
      _
    $region23: #{tpu_custom_call.1} parent=1 // pred_check_branch
      %123 = sbr.rel (0) target = $region25
    $region24: #{tpu_custom_call.1} parent=1 // pred_region
      %s125 = ssub.s32 128, 128
      %126 = vsyncadd [#allocation4], %s125
      %s128 = sshll.u32 [#allocation7], 4
      %s129 = int_to_ptr.vmem [resolvable:$true] %s128
      %131 = dma.vmem_to_hbm [thread:$0]  %s129, 128, %s2, [#allocation4]
    $region25: #{tpu_custom_call.1} parent=1 // pred_fallthru
      _
    // Predicated region
    $region26: #{tpu_custom_call.1} parent=1 // pred_check
      _
    $region27: #{tpu_custom_call.1} parent=1 // pred_check_branch
      %133 = sbr.rel (0) target = $region29
    $region28: #{tpu_custom_call.1} parent=1 // pred_region
      %s135 = ssub.s32 128, 128
      %136 = vsyncadd [#allocation9], %s135
      %s138 = sshll.u32 [#allocation8], 4
      %s139 = int_to_ptr.vmem [resolvable:$true] %s138
      %141 = dma.vmem_to_hbm [thread:$0]  %s139, 128, %s3, [#allocation9]
    $region29: #{tpu_custom_call.1} parent=1 // pred_fallthru
      _
    // Predicated region
    $region30: #{tpu_custom_call.1} parent=1 // pred_check
      _
    $region31: #{tpu_custom_call.1} parent=1 // pred_check_branch
      %143 = sbr.rel (0) target = $region33
    $region32: #{tpu_custom_call.1} parent=1 // pred_region
      %144 = dma.done [#allocation4], 128
    $region33: #{tpu_custom_call.1} parent=1 // pred_fallthru
      _
    // Predicated region
    $region34: #{tpu_custom_call.1} parent=1 // pred_check
      _
    $region35: #{tpu_custom_call.1} parent=1 // pred_check_branch
      %146 = sbr.rel (0) target = $region37
    $region36: #{tpu_custom_call.1} parent=1 // pred_region
      %147 = dma.done [#allocation9], 128
    $region37: #{tpu_custom_call.1} parent=1 // pred_fallthru
      _
    %148 = vsyncpa [#allocation3], 1
    %149 = vsyncpa [#allocation6], 1
    %150 = vsyncpa [#allocation4], 1
    %151 = vsyncpa [#allocation9], 1

</llo_original>
